<compile_context>
chip_gen: v7x
topology: tpu7x:2x2x1
jax: 0.10.0
libtpu: 0.0.40
codegen_flags: <defaults>
</compile_context>

<pallas_src>
import math
import functools

import jax
import jax.numpy as jnp
from jax import lax
from jax.experimental import pallas as pl
from jax.experimental.pallas import tpu as pltpu


# ----------------------------- small helpers -------------------------------

def _round_up(x, m):
    return ((x + m - 1) // m) * m if x > 0 else m


def _sublane_multiple(dtype):
    # 8 rows for 32-bit, 16 for 16-bit, 32 for 8-bit (native vreg packing).
    return max(8, 32 // jnp.dtype(dtype).itemsize)


def _pad2d(a, shape):
    pads = tuple((0, t - s) for s, t in zip(a.shape, shape))
    if all(p == (0, 0) for p in pads):
        return a
    return jnp.pad(a, pads)


def _prepare_weight(weight, Kp, Op, compute_dtype=None):
    """(out_dim, in_dim) -> padded (Kp, Op) in MXU-native (K, N) layout.

    Weights are static across calls: under jit this transform is hoisted /
    constant-folded; in eager deployments cache the result across forwards.
    """
    w = weight if compute_dtype is None else weight.astype(compute_dtype)
    return _pad2d(w.T, (Kp, Op))


# ------------------------------- kernels -----------------------------------

def _equal_linear_matmul_kernel(*refs, scale, activation, has_bias, acc_in_out):
    if acc_in_out:
        if has_bias:
            x_ref, w_ref, b_ref, o_ref = refs
        else:
            x_ref, w_ref, o_ref = refs
            b_ref = None
        acc_ref = o_ref                       # f32 output doubles as accumulator
    else:
        if has_bias:
            x_ref, w_ref, b_ref, o_ref, acc_ref = refs
        else:
            x_ref, w_ref, o_ref, acc_ref = refs
            b_ref = None

    k = pl.program_id(2)

    @pl.when(k == 0)
    def _():
        acc_ref[...] = jnp.zeros_like(acc_ref)

    # x: (tm, tk), w: (tk, tn)  -> MXU-native (M,K)x(K,N), no transpose.
    acc_ref[...] += lax.dot_general(
        x_ref[...], w_ref[...],
        dimension_numbers=(((1,), (0,)), ((), ())),
        preferred_element_type=jnp.float32)

    @pl.when(k == pl.num_programs(2) - 1)
    def _():
        # Scalar scale / bias on the small output tile (constants pre-folded:
        # scale already includes sqrt(2) for fused_lrelu; bias includes lr_mul).
        out = acc_ref[...] * jnp.float32(scale)
        if has_bias:
            out = out + b_ref[...]
        if activation == 'fused_lrelu':
            out = jnp.where(out >= 0, out, 0.2 * out)
        elif activation == 'tanh':
            out = jnp.tanh(out)
        # sqrt_softmax is handled by a second, row-wise kernel.
        o_ref[...] = out.astype(o_ref.dtype)


def _sqrt_softmax_kernel(z_ref, o_ref, *, out_dim):
    z = z_ref[...]                                     # (tm_s, Op) f32 logits
    col = lax.broadcasted_iota(jnp.int32, z.shape, 1)
    valid = col < out_dim
    m = jnp.max(jnp.where(valid, z, -jnp.inf), axis=1, keepdims=True)
    # sqrt(softmax(z)) = h / sqrt(sum h^2) with h = exp((z - m)/2):
    # one exp + one rsqrt instead of exp -> reciprocal -> sqrt.
    h = jnp.where(valid, jnp.exp(0.5 * (z - m)), 0.0)
    denom = jnp.sum(h * h, axis=1, keepdims=True)
    o_ref[...] = (h * lax.rsqrt(denom)).astype(o_ref.dtype)


# ------------------------------- wrapper ------------------------------------

def equal_linear(x, weight, bias=None, *, lr_mul=1.0, activation=None,
                 compute_dtype=None, tm=None, tn=256, tk=None):
    """Pallas implementation of EqualLinear.forward.

    x:      (N, in_dim)
    weight: (out_dim, in_dim)   -- as stored by the module (already / lr_mul)
    bias:   (out_dim,) or None
    """
    N, in_dim = x.shape
    out_dim = weight.shape[0]
    scale = lr_mul if in_dim == 0 else (1.0 / math.sqrt(in_dim)) * lr_mul
    has_bias = bias is not None

    if compute_dtype is not None:
        x = x.astype(compute_dtype)
    cdtype = x.dtype
    itemsize = jnp.dtype(cdtype).itemsize

    # ---- fold constants ----
    sqrt2 = math.sqrt(2.0)
    act_gain = sqrt2 if activation == 'fused_lrelu' else 1.0
    scale_eff = scale * act_gain                     # applied to the matmul tile
    bias_gain = lr_mul * act_gain                    # applied once to the bias

    # ---- tile sizes (dtype-aware sublanes, 256-friendly lanes) ----
    sublane = _sublane_multiple(cdtype)
    lane = 128
    if tm is None:
        tm = 1024 if itemsize <= 2 else 512          # weight reuse grows with tm
    if tk is None:
        tk = 1024 if in_dim >= 4096 else 512         # fewer, larger K steps

    tm_eff = min(tm, _round_up(max(N, 1), sublane))
    tk_eff = min(tk, _round_up(max(in_dim, 1), lane))
    tn_eff = min(tn, _round_up(out_dim, lane))

    # v7x megacore: if both parallel axes collapse to a single block, halve tn
    # (when it stays 128-aligned) so both TensorCores get work.
    if (_round_up(max(N, 1), tm_eff) // tm_eff == 1
            and _round_up(out_dim, tn_eff) // tn_eff == 1
            and tn_eff % 256 == 0):
        tn_eff //= 2

    Np = _round_up(max(N, 1), tm_eff)
    Kp = _round_up(max(in_dim, 1), tk_eff)
    Op = _round_up(out_dim, tn_eff)

    # ---- operand prep (pads are skipped when shapes already divide) ----
    xp = _pad2d(x, (Np, Kp))
    wp = _prepare_weight(weight, Kp, Op, compute_dtype)   # (K, N) layout, padded

    mm_activation = None if activation == 'sqrt_softmax' else activation
    mm_out_dtype = jnp.float32 if activation == 'sqrt_softmax' else cdtype
    acc_in_out = jnp.dtype(mm_out_dtype) == jnp.dtype(jnp.float32)
    o_itemsize = jnp.dtype(mm_out_dtype).itemsize

    in_specs = [
        pl.BlockSpec((tm_eff, tk_eff), lambda i, j, k: (i, k)),   # x
        pl.BlockSpec((tk_eff, tn_eff), lambda i, j, k: (k, j)),   # weight (K, N)
    ]
    operands = [xp, wp]
    if has_bias:
        b_eff = bias.astype(jnp.float32) * jnp.float32(bias_gain)
        bp = _pad2d(b_eff.reshape(1, out_dim), (1, Op))
        in_specs.append(pl.BlockSpec((1, tn_eff), lambda i, j, k: (0, j)))
        operands.append(bp)

    scratch_shapes = [] if acc_in_out else [pltpu.VMEM((tm_eff, tn_eff), jnp.float32)]

    # ---- VMEM budget from the real (double-buffered) footprint ----
    footprint = (2 * (tm_eff * tk_eff * itemsize
                      + tk_eff * tn_eff * itemsize
                      + (tn_eff * 4 if has_bias else 0))
                 + 2 * tm_eff * tn_eff * o_itemsize
                 + (0 if acc_in_out else tm_eff * tn_eff * 4))
    vmem_limit = int(min(96 << 20, max(2 * footprint + (8 << 20), 16 << 20)))

    cost = pl.CostEstimate(
        flops=2 * Np * Op * Kp,
        transcendentals=Np * Op if mm_activation == 'tanh' else 0,
        bytes_accessed=(Np * Kp * itemsize + Kp * Op * itemsize
                        + Np * Op * o_itemsize + (Op * 4 if has_bias else 0)))

    kernel = functools.partial(
        _equal_linear_matmul_kernel,
        scale=scale_eff, activation=mm_activation,
        has_bias=has_bias, acc_in_out=acc_in_out)

    out = pl.pallas_call(
        kernel,
        out_shape=jax.ShapeDtypeStruct((Np, Op), mm_out_dtype),
        grid_spec=pltpu.PrefetchScalarGridSpec(
            num_scalar_prefetch=0,
            grid=(Np // tm_eff, Op // tn_eff, Kp // tk_eff),
            in_specs=in_specs,
            out_specs=pl.BlockSpec((tm_eff, tn_eff), lambda i, j, k: (i, j)),
            scratch_shapes=scratch_shapes,
        ),
        compiler_params=pltpu.CompilerParams(
            dimension_semantics=("parallel", "parallel", "arbitrary"),
            vmem_limit_bytes=vmem_limit,
        ),
        cost_estimate=cost,
    )(*operands)

    if activation == 'sqrt_softmax':
        # Second pass: row-wise sqrt-softmax over the full (padded) out_dim.
        # Row tile chosen so the (tm_s, Op) f32 block stays small; tm_s divides Np.
        tm_s = tm_eff
        while ((tm_s * Op * 4) > (8 << 20)
               and tm_s % 2 == 0 and (tm_s // 2) % sublane == 0):
            tm_s //= 2

        sm_footprint = 2 * tm_s * Op * (4 + itemsize)
        sm_vmem = int(min(96 << 20, max(2 * sm_footprint + (8 << 20), 16 << 20)))

        out = pl.pallas_call(
            functools.partial(_sqrt_softmax_kernel, out_dim=out_dim),
            out_shape=jax.ShapeDtypeStruct((Np, Op), cdtype),
            grid_spec=pltpu.PrefetchScalarGridSpec(
                num_scalar_prefetch=0,
                grid=(Np // tm_s,),
                in_specs=[pl.BlockSpec((tm_s, Op), lambda i: (i, 0))],
                out_specs=pl.BlockSpec((tm_s, Op), lambda i: (i, 0)),
            ),
            compiler_params=pltpu.CompilerParams(
                dimension_semantics=("parallel",),
                vmem_limit_bytes=sm_vmem,
            ),
            cost_estimate=pl.CostEstimate(
                flops=5 * Np * Op,
                transcendentals=Np * Op,
                bytes_accessed=Np * Op * (4 + itemsize)),
        )(out)

    return out[:N, :out_dim]


# ------------------------------ reference -----------------------------------

def _ref_forward(x, weight, bias, *, lr_mul=1.0, activation=None):
    """Pure-JAX reference mirroring the PyTorch forward."""
    in_dim = x.shape[1]
    scale = lr_mul if in_dim == 0 else (1.0 / math.sqrt(in_dim)) * lr_mul
    b = bias * lr_mul if bias is not None else 0.0
    out = x @ (weight * scale).T + b
    if activation == 'fused_lrelu':
        out = jnp.where(out >= 0, out, 0.2 * out) * math.sqrt(2.0)
    elif activation == 'tanh':
        out = jnp.tanh(out)
    elif activation == 'sqrt_softmax':
        out = jnp.sqrt(jax.nn.softmax(out, axis=1))
    return out


if __name__ == "__main__":
    key = jax.random.PRNGKey(0)
    k_x, k_w = jax.random.split(key)

    batch, in_dim, out_dim = 8, 32, 32
    lr_mul = 0.01
    bias_init = 0.0

    # Parameters matching the module's __init__:
    #   weight ~ randn(out_dim, in_dim) / lr_mul ; bias = full(out_dim, bias_init)
    x = jax.random.normal(k_x, (batch, in_dim), dtype=jnp.float32)
    weight = jax.random.normal(k_w, (out_dim, in_dim), dtype=jnp.float32) / lr_mul
    bias = jnp.full((out_dim,), bias_init, dtype=jnp.float32)

    ok = True
    for act in (None, 'fused_lrelu', 'tanh', 'sqrt_softmax'):
        out = jax.block_until_ready(
            equal_linear(x, weight, bias, lr_mul=lr_mul, activation=act))
        ref = _ref_forward(x, weight, bias, lr_mul=lr_mul, activation=act)
        if not jnp.allclose(out, ref, atol=1e-4, rtol=1e-4):
            ok = False
            print(f"mismatch for activation={act}")

    # No-bias path (bias operand is not constructed / DMA'd).
    out_nb = jax.block_until_ready(
        equal_linear(x, weight, None, lr_mul=lr_mul, activation=None))
    ref_nb = _ref_forward(x, weight, None, lr_mul=lr_mul, activation=None)
    if not jnp.allclose(out_nb, ref_nb, atol=1e-4, rtol=1e-4):
        ok = False
        print("mismatch for no-bias path")

    # bf16 operand path (f32 MXU accumulation); loose tolerance for bf16 inputs.
    out_bf = jax.block_until_ready(
        equal_linear(x, weight, bias, lr_mul=lr_mul, activation=None,
                     compute_dtype=jnp.bfloat16))
    ref_bf = _ref_forward(x, weight, bias, lr_mul=lr_mul, activation=None)
    if not jnp.allclose(out_bf.astype(jnp.float32), ref_bf, atol=5e-2, rtol=5e-2):
        ok = False
        print("mismatch for bf16 path")

    if ok:
        print("KERNEL_OK")
</pallas_src>

<mosaic_0001>
module attributes {stable_mosaic.version = 11 : i64} {
  func.func @_equal_linear_matmul_kernel(%arg0: i32, %arg1: i32, %arg2: i32, %arg3: memref<8x128xf32, #tpu.memory_space<vmem>>, %arg4: memref<128x128xf32, #tpu.memory_space<vmem>>, %arg5: memref<1x128xf32, #tpu.memory_space<vmem>>, %arg6: memref<8x128xf32, #tpu.memory_space<vmem>>) attributes {dimension_semantics = [#tpu.dimension_semantics<parallel>, #tpu.dimension_semantics<parallel>, #tpu.dimension_semantics<arbitrary>], iteration_bounds = array<i64: 1, 1, 1>, scalar_prefetch = 0 : i64, scratch_operands = 0 : i64, tpu.core_type = #tpu.core_type<tc>, window_params = [{transform_indices = @transform_0, window_bounds = array<i64: 8, 128>}, {transform_indices = @transform_1, window_bounds = array<i64: 128, 128>}, {transform_indices = @transform_2, window_bounds = array<i64: 1, 128>}, {transform_indices = @transform_3, window_bounds = array<i64: 8, 128>}]} {
    %c0_i32 = arith.constant 0 : i32
    %0 = arith.cmpi eq, %arg2, %c0_i32 : i32
    %1 = arith.extui %0 : i1 to i32
    %c0_i32_0 = arith.constant 0 : i32
    %2 = arith.cmpi ne, %1, %c0_i32_0 : i32
    scf.if %2 {
      %cst_10 = arith.constant 0.000000e+00 : f32
      %12 = vector.broadcast %cst_10 : f32 to vector<8x128xf32>
      %c0_11 = arith.constant 0 : index
      %c0_12 = arith.constant 0 : index
      %13 = vector.load %arg6[%c0_11, %c0_12] : memref<8x128xf32, #tpu.memory_space<vmem>>, vector<8x128xf32>
      tpu.vector_store %arg6[%c0_11, %c0_12], %12 {strides = array<i32>} : memref<8x128xf32, #tpu.memory_space<vmem>>, vector<8x128xf32>,
    } else {
    }
    %c0 = arith.constant 0 : index
    %c0_1 = arith.constant 0 : index
    %3 = vector.load %arg6[%c0, %c0_1] : memref<8x128xf32, #tpu.memory_space<vmem>>, vector<8x128xf32>
    %c0_2 = arith.constant 0 : index
    %c0_3 = arith.constant 0 : index
    %4 = vector.load %arg3[%c0_2, %c0_3] : memref<8x128xf32, #tpu.memory_space<vmem>>, vector<8x128xf32>
    %c0_4 = arith.constant 0 : index
    %c0_5 = arith.constant 0 : index
    %5 = vector.load %arg4[%c0_4, %c0_5] : memref<128x128xf32, #tpu.memory_space<vmem>>, vector<128x128xf32>
    %cst = arith.constant dense<0.000000e+00> : vector<8x128xf32>
    %6 = tpu.matmul %4, %5, %cst {dimension_numbers = #tpu.dot_dimension_numbers<[1], [0], [0], [1], [0, 0, 1, 1], [], []>} : vector<8x128xf32>, vector<128x128xf32>, vector<8x128xf32> -> vector<8x128xf32>
    %7 = arith.addf %3, %6 : vector<8x128xf32>
    %c0_6 = arith.constant 0 : index
    %c0_7 = arith.constant 0 : index
    %8 = vector.load %arg6[%c0_6, %c0_7] : memref<8x128xf32, #tpu.memory_space<vmem>>, vector<8x128xf32>
    tpu.vector_store %arg6[%c0_6, %c0_7], %7 {strides = array<i32>} : memref<8x128xf32, #tpu.memory_space<vmem>>, vector<8x128xf32>,
    %c0_i32_8 = arith.constant 0 : i32
    %9 = arith.cmpi eq, %arg2, %c0_i32_8 : i32
    %10 = arith.extui %9 : i1 to i32
    %c0_i32_9 = arith.constant 0 : i32
    %11 = arith.cmpi ne, %10, %c0_i32_9 : i32
    scf.if %11 {
      %c0_10 = arith.constant 0 : index
      %c0_11 = arith.constant 0 : index
      %12 = vector.load %arg6[%c0_10, %c0_11] : memref<8x128xf32, #tpu.memory_space<vmem>>, vector<8x128xf32>
      %cst_12 = arith.constant 0.00176776689 : f32
      %13 = vector.broadcast %cst_12 : f32 to vector<8x128xf32>
      %14 = arith.mulf %12, %13 : vector<8x128xf32>
      %c0_13 = arith.constant 0 : index
      %c0_14 = arith.constant 0 : index
      %15 = vector.load %arg5[%c0_13, %c0_14] : memref<1x128xf32, #tpu.memory_space<vmem>>, vector<1x128xf32>
      %16 = vector.broadcast %15 : vector<1x128xf32> to vector<8x128xf32>
      %17 = arith.addf %14, %16 : vector<8x128xf32>
      %c0_15 = arith.constant 0 : index
      %c0_16 = arith.constant 0 : index
      %18 = vector.load %arg6[%c0_15, %c0_16] : memref<8x128xf32, #tpu.memory_space<vmem>>, vector<8x128xf32>
      tpu.vector_store %arg6[%c0_15, %c0_16], %17 {strides = array<i32>} : memref<8x128xf32, #tpu.memory_space<vmem>>, vector<8x128xf32>,
    } else {
    }
    return
  }
  func.func @transform_0(%arg0: i32, %arg1: i32, %arg2: i32) -> (i32, i32) {
    %c0_i32 = arith.constant 0 : i32
    return %arg0, %arg2 : i32, i32
  }
  func.func @transform_1(%arg0: i32, %arg1: i32, %arg2: i32) -> (i32, i32) {
    %c0_i32 = arith.constant 0 : i32
    return %arg2, %arg1 : i32, i32
  }
  func.func @transform_2(%arg0: i32, %arg1: i32, %arg2: i32) -> (i32, i32) {
    %c0_i32 = arith.constant 0 : i32
    %c0_i32_0 = arith.constant 0 : i32
    return %c0_i32, %arg1 : i32, i32
  }
  func.func @transform_3(%arg0: i32, %arg1: i32, %arg2: i32) -> (i32, i32) {
    %c0_i32 = arith.constant 0 : i32
    return %arg0, %arg1 : i32, i32
  }
}

</mosaic_0001>

<llo_original>
// kernel: tpu_custom_call.1
$region0: #{tpu_custom_call.1}
  #allocation0 [shape = 'u32[]', space=smem, size = 0x4, offset = 0x4, fixed_abs, tag = 'smem constant byte address 0x4 - core index']
  #allocation1 [shape = 'u32[144,128]{1,0:T(1,128)}', space=vmem, size = 0x12000, scoped, tag = 'internal scratch']
  %s0 = inlined_call_operand.hbm [shape: f32[8,128], index: 0, kind: input, shape index: {}]
  %s1 = inlined_call_operand.hbm [shape: f32[128,128], index: 1, kind: input, shape index: {}]
  %s2 = inlined_call_operand.vmem [shape: f32[1,128], index: 2, kind: input, shape index: {}]
  %s3 = inlined_call_operand.hbm [shape: f32[8,128], index: 3, kind: output, shape index: {}]
  %s4 = sld [smem:[#allocation0]]
  $region38: #{tpu_custom_call.1} parent=0
    _
  %s6 = ssub.s32 1, %s4
  %s7 = scalar_select 0, %s6, %s4
  $region1: #{tpu_custom_call.1} parent=0
    #allocation2 [shape = 'u8[4096]{0}', space=vmem, size = 0x1000, scoped, tag = 'input window, operand 0, single buffered']
    #allocation3 [shape = 's32[1]{0}', space=sflag, size = 0x4, scoped, tag = 'scoped memory for tpu_custom_call.1']
    #allocation4 [shape = 's32[1]{0}', space=sflag, size = 0x4, scoped, tag = 'scoped memory for tpu_custom_call.1']
    #allocation5 [shape = 'u8[65536]{0}', space=vmem, size = 0x10000, scoped, tag = 'input window, operand 1, single buffered']
    #allocation6 [shape = 's32[1]{0}', space=sflag, size = 0x4, scoped, tag = 'scoped memory for tpu_custom_call.1']
    #allocation7 [shape = 'u8[4096]{0}', space=vmem, size = 0x1000, scoped, tag = 'output window, operand 0, single buffered']
    %8 = vsyncpa [#allocation3], 0
    %9 = vsyncpa [#allocation6], 0
    %10 = vsyncpa [#allocation4], 0
    // Predicated region
    $region2: #{tpu_custom_call.1} parent=1 // pred_check
      _
    $region3: #{tpu_custom_call.1} parent=1 // pred_check_branch
      %12 = sbr.rel (0) target = $region5
    $region4: #{tpu_custom_call.1} parent=1 // pred_region
      %s14 = ssub.s32 128, 128
      %15 = vsyncadd [#allocation3], %s14
      %s17 = sshll.u32 [#allocation2], 4
      %s18 = int_to_ptr.vmem [resolvable:$true] %s17
      %20 = dma.hbm_to_vmem [thread:$0]  %s0, 128, %s18, [#allocation3]
    $region5: #{tpu_custom_call.1} parent=1 // pred_fallthru
      _
    // Predicated region
    $region6: #{tpu_custom_call.1} parent=1 // pred_check
      _
    $region7: #{tpu_custom_call.1} parent=1 // pred_check_branch
      %22 = sbr.rel (0) target = $region9
    $region8: #{tpu_custom_call.1} parent=1 // pred_region
      %s24 = ssub.s32 2048, 2048
      %25 = vsyncadd [#allocation6], %s24
      %s26 = sshll.u32 [#allocation5], 4
      %s27 = int_to_ptr.vmem [resolvable:$true] %s26
      %32 = dma.hbm_to_vmem [thread:$0]  %s1, 2048, %s27, [#allocation6], 128, 128, 8
    $region9: #{tpu_custom_call.1} parent=1 // pred_fallthru
      _
    // Predicated region
    $region10: #{tpu_custom_call.1} parent=1 // pred_check
      _
    $region11: #{tpu_custom_call.1} parent=1 // pred_check_branch
      %34 = sbr.rel (0) target = $region13
    $region12: #{tpu_custom_call.1} parent=1 // pred_region
      _
    $region13: #{tpu_custom_call.1} parent=1 // pred_fallthru
      _
    // Predicated region
    $region14: #{tpu_custom_call.1} parent=1 // pred_check
      _
    $region15: #{tpu_custom_call.1} parent=1 // pred_check_branch
      %36 = sbr.rel (0) target = $region17
    $region16: #{tpu_custom_call.1} parent=1 // pred_region
      %37 = dma.done [#allocation3], 128
    $region17: #{tpu_custom_call.1} parent=1 // pred_fallthru
      _
    // Predicated region
    $region18: #{tpu_custom_call.1} parent=1 // pred_check
      _
    $region19: #{tpu_custom_call.1} parent=1 // pred_check_branch
      %39 = sbr.rel (0) target = $region21
    $region20: #{tpu_custom_call.1} parent=1 // pred_region
      %40 = dma.done [#allocation6], 2048
    $region21: #{tpu_custom_call.1} parent=1 // pred_fallthru
      _
    %p41 = scmp.eq.s32.totalorder 0, 0
    // Predicated region
    $region22: #{tpu_custom_call.1} parent=1 // pred_check
      %p42 = pneg %p41
    $region23: #{tpu_custom_call.1} parent=1 // pred_check_branch
      %44 = sbr.rel (%p42) target = $region25
    $region24: #{tpu_custom_call.1} parent=1 // pred_region
      %45 = vst [vmem:[#allocation7] sm:$0xff] 0.0
    $region25: #{tpu_custom_call.1} parent=1 // pred_fallthru
      _
    %v46 = vld [vmem:[#allocation7] sm:$0xff]
    %v47 = vld [vmem:[#allocation2] sm:$0xff]
    %v48 = vld [vmem:[#allocation5] sm:$0xff]
    %v49 = vld [vmem:[#allocation5 + $0x8] sm:$0xff]
    %v50 = vld [vmem:[#allocation5 + $0x10] sm:$0xff]
    %v51 = vld [vmem:[#allocation5 + $0x18] sm:$0xff]
    %v52 = vld [vmem:[#allocation5 + $0x20] sm:$0xff]
    %v53 = vld [vmem:[#allocation5 + $0x28] sm:$0xff]
    %v54 = vld [vmem:[#allocation5 + $0x30] sm:$0xff]
    %v55 = vld [vmem:[#allocation5 + $0x38] sm:$0xff]
    %v56 = vld [vmem:[#allocation5 + $0x40] sm:$0xff]
    %v57 = vld [vmem:[#allocation5 + $0x48] sm:$0xff]
    %v58 = vld [vmem:[#allocation5 + $0x50] sm:$0xff]
    %v59 = vld [vmem:[#allocation5 + $0x58] sm:$0xff]
    %v60 = vld [vmem:[#allocation5 + $0x60] sm:$0xff]
    %v61 = vld [vmem:[#allocation5 + $0x68] sm:$0xff]
    %v62 = vld [vmem:[#allocation5 + $0x70] sm:$0xff]
    %v63 = vld [vmem:[#allocation5 + $0x78] sm:$0xff]
    %64 = vmatprep.subr.mxu0 0.0
    %65 = vmatpush1.msra.mxu0 %v48
    %66 = vmatprep.subr.mxu0 0.0
    %67 = vmatpush1.msra.mxu0 %v49
    %68 = vmatprep.subr.mxu0 0.0
    %69 = vmatpush1.msra.mxu0 %v50
    %70 = vmatprep.subr.mxu0 0.0
    %71 = vmatpush1.msra.mxu0 %v51
    %72 = vmatprep.subr.mxu0 0.0
    %73 = vmatpush1.msra.mxu0 %v52
    %74 = vmatprep.subr.mxu0 0.0
    %75 = vmatpush1.msra.mxu0 %v53
    %76 = vmatprep.subr.mxu0 0.0
    %77 = vmatpush1.msra.mxu0 %v54
    %78 = vmatprep.subr.mxu0 0.0
    %79 = vmatpush1.msra.mxu0 %v55
    %80 = vmatprep.subr.mxu0 0.0
    %81 = vmatpush1.msra.mxu0 %v56
    %82 = vmatprep.subr.mxu0 0.0
    %83 = vmatpush1.msra.mxu0 %v57
    %84 = vmatprep.subr.mxu0 0.0
    %85 = vmatpush1.msra.mxu0 %v58
    %86 = vmatprep.subr.mxu0 0.0
    %87 = vmatpush1.msra.mxu0 %v59
    %88 = vmatprep.subr.mxu0 0.0
    %89 = vmatpush1.msra.mxu0 %v60
    %90 = vmatprep.subr.mxu0 0.0
    %91 = vmatpush1.msra.mxu0 %v61
    %92 = vmatprep.subr.mxu0 0.0
    %93 = vmatpush1.msra.mxu0 %v62
    %94 = vmatprep.subr.mxu0 0.0
    %95 = vmatpush1.msra.mxu0 %v63
    %96 = vmatprep.subr.mxu0 0.0
    %97 = vmatpush1.msra.mxu0 0.0
    %98 = vmatprep.subr.mxu0 0.0
    %99 = vmatpush1.msra.mxu0 0.0
    %100 = vmatprep.subr.mxu0 0.0
    %101 = vmatpush1.msra.mxu0 0.0
    %102 = vmatprep.subr.mxu0 0.0
    %103 = vmatpush1.msra.mxu0 0.0
    %104 = vmatprep.subr.mxu0 0.0
    %105 = vmatpush1.msra.mxu0 0.0
    %106 = vmatprep.subr.mxu0 0.0
    %107 = vmatpush1.msra.mxu0 0.0
    %108 = vmatprep.subr.mxu0 0.0
    %109 = vmatpush1.msra.mxu0 0.0
    %110 = vmatprep.subr.mxu0 0.0
    %111 = vmatpush1.msra.mxu0 0.0
    %112 = vmatprep.subr.mxu0 0.0
    %113 = vmatpush1.msra.mxu0 0.0
    %114 = vmatprep.subr.mxu0 0.0
    %115 = vmatpush1.msra.mxu0 0.0
    %116 = vmatprep.subr.mxu0 0.0
    %117 = vmatpush1.msra.mxu0 0.0
    %118 = vmatprep.subr.mxu0 0.0
    %119 = vmatpush1.msra.mxu0 0.0
    %120 = vmatprep.subr.mxu0 0.0
    %121 = vmatpush1.msra.mxu0 0.0
    %122 = vmatprep.subr.mxu0 0.0
    %123 = vmatpush1.msra.mxu0 0.0
    %124 = vmatprep.subr.mxu0 0.0
    %125 = vmatpush1.msra.mxu0 0.0
    %126 = vmatprep.subr.mxu0 0.0
    %127 = vmatpush1.msra.mxu0 0.0
    %128 = vmatprep.mubr.f32.mxu0 0.0
    %129 = vmatmul.mubr.f32.gmra.mrb[0].mxu0 %v47
    %v130 = vpop.f32.mrb[0].mxu0
    %v131 = vadd.f32 0.0, %v130
    %v132 = vpop.f32.mrb[0].mxu0
    %133 = vdwg.mxu0
    %v134 = vadd.f32 %v46, %v131
    %135 = vst [vmem:[#allocation7] sm:$0xff] %v134
    // Predicated region
    $region26: #{tpu_custom_call.1} parent=1 // pred_check
      %p136 = pneg %p41
    $region27: #{tpu_custom_call.1} parent=1 // pred_check_branch
      %138 = sbr.rel (%p136) target = $region29
    $region28: #{tpu_custom_call.1} parent=1 // pred_region
      %v139 = vld [vmem:[#allocation7] sm:$0xff]
      %v140 = vmul.f32 %v139, 0.0017677669
      %v141 = vld [vmem:[%s2] sm:$0x1]
      %v143 = vlaneseq
      %v144 = vshrl.u32 %v143, 7
      %v145 = vsub.s32 0, %v144
      %v146 = vrot.slane %v141, %v145
      %v148 = vadd.f32 %v140, %v146
      %149 = vst [vmem:[#allocation7] sm:$0xff] %v148
    $region29: #{tpu_custom_call.1} parent=1 // pred_fallthru
      _
    // Predicated region
    $region30: #{tpu_custom_call.1} parent=1 // pred_check
      _
    $region31: #{tpu_custom_call.1} parent=1 // pred_check_branch
      %151 = sbr.rel (0) target = $region33
    $region32: #{tpu_custom_call.1} parent=1 // pred_region
      %s153 = ssub.s32 128, 128
      %154 = vsyncadd [#allocation4], %s153
      %s156 = sshll.u32 [#allocation7], 4
      %s157 = int_to_ptr.vmem [resolvable:$true] %s156
      %159 = dma.vmem_to_hbm [thread:$0]  %s157, 128, %s3, [#allocation4]
    $region33: #{tpu_custom_call.1} parent=1 // pred_fallthru
      _
    // Predicated region
    $region34: #{tpu_custom_call.1} parent=1 // pred_check
      _
    $region35: #{tpu_custom_call.1} parent=1 // pred_check_branch
      %161 = sbr.rel (0) target = $region37
    $region36: #{tpu_custom_call.1} parent=1 // pred_region
      %162 = dma.done [#allocation4], 128
    $region37: #{tpu_custom_call.1} parent=1 // pred_fallthru
      _
    %163 = vsyncpa [#allocation3], 1
    %164 = vsyncpa [#allocation6], 1
    %165 = vsyncpa [#allocation4], 1

</llo_original>
